<compile_context>
chip_gen: v6e
topology: v6e:2x2x1
jax: 0.10.0
libtpu: 0.0.40
codegen_flags: <defaults>
</compile_context>

<pallas_src>
import functools

import jax
import jax.numpy as jnp
from jax.experimental import pallas as pl
from jax.experimental.pallas import tpu as pltpu


def _round_up(x: int, m: int) -> int:
    return ((x + m - 1) // m) * m


def qnet_kernel(obs_ref, w1_ref, b1_ref, w2_ref, b2_ref, w3_ref, b3_ref, out_ref):
    """Fused 3-layer MLP forward for one batch tile.

    obs arrives as f32 and is cast to bf16 on the VPU right before the first
    matmul; weights are bf16 (MXU-native); biases and accumulation are f32;
    the (lane-padded) output is written back as bf16.
    """
    x = obs_ref[...].astype(jnp.bfloat16)  # in-kernel cast (f32 -> bf16)

    # Layer 1: Linear(obs_dim -> hidden) + ReLU  (bf16 matmul, f32 accumulate)
    h = jnp.dot(x, w1_ref[...], preferred_element_type=jnp.float32) + b1_ref[...]
    h = jnp.maximum(h, 0.0).astype(jnp.bfloat16)

    # Layer 2: Linear(hidden -> hidden) + ReLU
    h = jnp.dot(h, w2_ref[...], preferred_element_type=jnp.float32) + b2_ref[...]
    h = jnp.maximum(h, 0.0).astype(jnp.bfloat16)

    # Layer 3: Linear(hidden -> action_dim_padded), no activation. Lane-dense,
    # unmasked stores; bf16 halves the padded writeback HBM traffic.
    q = jnp.dot(h, w3_ref[...], preferred_element_type=jnp.float32) + b3_ref[...]
    out_ref[...] = q.astype(out_ref.dtype)


def prepare_qnet_params(params):
    """One-time parameter preparation (hoisted out of the per-call hot path).

    - Lane-pads the last layer to a multiple of 128 output lanes (zeros) so the
      kernel does a full-width final matmul and unmasked stores.
    - Casts weights to bf16 (MXU-native) and biases to f32.

    params: (w1, b1, w2, b2, w3, b3) with weights stored (in, out), biases (1, out).
    """
    w1, b1, w2, b2, w3, b3 = params
    hidden_dim = w1.shape[1]
    action_dim = w3.shape[1]

    n_pad = max(128, _round_up(action_dim, 128))
    if n_pad != action_dim:
        # Padded lanes get zero weight/bias -> Q=0 there; wrapper slices them off.
        w3 = jnp.zeros((hidden_dim, n_pad), w3.dtype).at[:, :action_dim].set(w3)
        b3 = jnp.zeros((1, n_pad), b3.dtype).at[:, :action_dim].set(b3)

    return {
        "w1": w1.astype(jnp.bfloat16),
        "b1": b1.astype(jnp.float32),
        "w2": w2.astype(jnp.bfloat16),
        "b2": b2.astype(jnp.float32),
        "w3": w3.astype(jnp.bfloat16),
        "b3": b3.astype(jnp.float32),
        "obs_dim": int(w1.shape[0]),
        "hidden_dim": int(hidden_dim),
        "action_dim": int(action_dim),
        "n_pad": int(n_pad),
    }


def qnet_forward(obs, prepared, *, batch_tile=512):
    """Fused QNet forward with Pallas, tiling over the batch dimension.

    obs: f32 (batch, obs_dim). prepared: output of prepare_qnet_params().
    Returns f32 Q-values of shape (batch, action_dim).
    """
    B, obs_dim = obs.shape
    assert obs_dim == prepared["obs_dim"]
    hidden_dim = prepared["hidden_dim"]
    action_dim = prepared["action_dim"]
    n_pad = prepared["n_pad"]

    # Batch tile selection:
    #  * B <= 32: single block (tiny inference path), no further tiling.
    #  * B >  32: big tiles (cap batch_tile, default 512) to amortize the
    #    ~0.35us/grid-step overhead, but always >= 2 grid steps so the
    #    "parallel" batch axis can shard across both TensorCores on v7x.
    if B <= 32:
        tb = B
    else:
        tb = min(batch_tile, _round_up(pl.cdiv(B, 2), 16))
    grid = (pl.cdiv(B, tb),)

    # Weights/biases are grid-invariant (same block every step); ~80 KB total at
    # hidden=128, so default double-buffering is negligible.
    full2d = lambda r, c: pl.BlockSpec((r, c), lambda i: (0, 0))

    out_padded = pl.pallas_call(
        qnet_kernel,
        out_shape=jax.ShapeDtypeStruct((B, n_pad), jnp.bfloat16),
        grid_spec=pltpu.PrefetchScalarGridSpec(
            num_scalar_prefetch=0,
            grid=grid,
            in_specs=[
                pl.BlockSpec((tb, obs_dim), lambda i: (i, 0)),  # obs tile (f32)
                full2d(obs_dim, hidden_dim),                     # w1 (bf16)
                full2d(1, hidden_dim),                           # b1 (f32)
                full2d(hidden_dim, hidden_dim),                  # w2 (bf16)
                full2d(1, hidden_dim),                           # b2 (f32)
                full2d(hidden_dim, n_pad),                       # w3 padded (bf16)
                full2d(1, n_pad),                                # b3 padded (f32)
            ],
            out_specs=pl.BlockSpec((tb, n_pad), lambda i: (i, 0)),
        ),
        compiler_params=pltpu.CompilerParams(
            # Parallel batch axis: with >=2 grid steps this shards across both
            # TensorCores on v7x; measured-neutral on v5e/v6e.
            dimension_semantics=("parallel",)
        ),
    )(obs, prepared["w1"], prepared["b1"], prepared["w2"], prepared["b2"],
      prepared["w3"], prepared["b3"])

    # Tiny (B, action_dim) slice + f32 cast; fuses under jit. Padded lanes are
    # zeros and must never be consumed directly (see header note).
    return out_padded[:, :action_dim].astype(jnp.float32)


def init_qnet_params(key, obs_dim, action_dim, hidden_dim=128, dtype=jnp.float32):
    """Deterministic init matching PyTorch nn.Linear semantics.

    PyTorch default: U(-1/sqrt(fan_in), 1/sqrt(fan_in)) for W (out,in) and b.
    We store W transposed as (in, out) for x @ W.
    """
    def linear(k, fan_in, fan_out):
        kw, kb = jax.random.split(k)
        bound = 1.0 / jnp.sqrt(jnp.asarray(fan_in, dtype=jnp.float32))
        w = jax.random.uniform(kw, (fan_in, fan_out), dtype, -bound, bound)
        b = jax.random.uniform(kb, (1, fan_out), dtype, -bound, bound)
        return w, b

    k1, k2, k3 = jax.random.split(key, 3)
    w1, b1 = linear(k1, obs_dim, hidden_dim)
    w2, b2 = linear(k2, hidden_dim, hidden_dim)
    w3, b3 = linear(k3, hidden_dim, action_dim)
    return (w1, b1, w2, b2, w3, b3)


def qnet_reference(obs, params):
    """Pure-JAX f32 reference of the PyTorch forward for validation."""
    w1, b1, w2, b2, w3, b3 = params
    h = jnp.maximum(obs @ w1 + b1, 0.0)
    h = jnp.maximum(h @ w2 + b2, 0.0)
    return h @ w3 + b3


if __name__ == "__main__":
    key = jax.random.PRNGKey(0)
    k_obs, k_obs_big, k_obs_odd, k_param = jax.random.split(key, 4)

    obs_dim = 32
    action_dim = 8
    hidden_dim = 128

    params = init_qnet_params(k_param, obs_dim, action_dim, hidden_dim)
    prepared = prepare_qnet_params(params)  # one-time: pad + bf16 cast (hoisted)

    # Hot-path callable: no per-call padding/casting, slice+cast fuse under jit.
    fwd = jax.jit(functools.partial(qnet_forward, prepared=prepared))

    # bf16 matmuls + f32 accumulation + bf16 writeback vs f32 reference.
    TOL = 5e-2

    # Small batch: single-block path (grid of 1).
    batch = 8
    obs = jax.random.normal(k_obs, (batch, obs_dim), dtype=jnp.float32)
    q = jax.block_until_ready(fwd(obs))
    q_ref = qnet_reference(obs, params)
    assert q.shape == (batch, action_dim), q.shape
    assert jnp.allclose(q, q_ref, atol=TOL, rtol=TOL), "small-batch mismatch"

    # Larger batch: two grid steps (tb=128) -> exercises the parallel batch axis.
    batch_big = 256
    obs_big = jax.random.normal(k_obs_big, (batch_big, obs_dim), dtype=jnp.float32)
    q_big = jax.block_until_ready(fwd(obs_big))
    q_big_ref = qnet_reference(obs_big, params)
    assert q_big.shape == (batch_big, action_dim), q_big.shape
    assert jnp.allclose(q_big, q_big_ref, atol=TOL, rtol=TOL), "big-batch mismatch"

    # Ragged batch: partial final block (masked output rows).
    batch_odd = 300
    obs_odd = jax.random.normal(k_obs_odd, (batch_odd, obs_dim), dtype=jnp.float32)
    q_odd = jax.block_until_ready(fwd(obs_odd))
    q_odd_ref = qnet_reference(obs_odd, params)
    assert q_odd.shape == (batch_odd, action_dim), q_odd.shape
    assert jnp.allclose(q_odd, q_odd_ref, atol=TOL, rtol=TOL), "odd-batch mismatch"

    print("KERNEL_OK")
</pallas_src>

<mosaic_0001>
module attributes {stable_mosaic.version = 11 : i64} {
  func.func @qnet_kernel(%arg0: i32, %arg1: memref<8x32xf32, #tpu.memory_space<vmem>>, %arg2: memref<32x128xbf16, #tpu.memory_space<vmem>>, %arg3: memref<1x128xf32, #tpu.memory_space<vmem>>, %arg4: memref<128x128xbf16, #tpu.memory_space<vmem>>, %arg5: memref<1x128xf32, #tpu.memory_space<vmem>>, %arg6: memref<128x128xbf16, #tpu.memory_space<vmem>>, %arg7: memref<1x128xf32, #tpu.memory_space<vmem>>, %arg8: memref<8x128xbf16, #tpu.memory_space<vmem>>) attributes {dimension_semantics = [#tpu.dimension_semantics<parallel>], iteration_bounds = array<i64: 1>, scalar_prefetch = 0 : i64, scratch_operands = 0 : i64, tpu.core_type = #tpu.core_type<tc>, window_params = [{transform_indices = @transform_0, window_bounds = array<i64: 8, 32>}, {pipeline_mode = #tpu.pipeline_mode<synchronous>, transform_indices = @transform_1, window_bounds = array<i64: 32, 128>}, {pipeline_mode = #tpu.pipeline_mode<synchronous>, transform_indices = @transform_2, window_bounds = array<i64: 1, 128>}, {pipeline_mode = #tpu.pipeline_mode<synchronous>, transform_indices = @transform_3, window_bounds = array<i64: 128, 128>}, {pipeline_mode = #tpu.pipeline_mode<synchronous>, transform_indices = @transform_4, window_bounds = array<i64: 1, 128>}, {pipeline_mode = #tpu.pipeline_mode<synchronous>, transform_indices = @transform_5, window_bounds = array<i64: 128, 128>}, {pipeline_mode = #tpu.pipeline_mode<synchronous>, transform_indices = @transform_6, window_bounds = array<i64: 1, 128>}, {transform_indices = @transform_7, window_bounds = array<i64: 8, 128>}]} {
    %c0 = arith.constant 0 : index
    %c0_0 = arith.constant 0 : index
    %0 = vector.load %arg1[%c0, %c0_0] : memref<8x32xf32, #tpu.memory_space<vmem>>, vector<8x32xf32>
    %1 = arith.truncf %0 : vector<8x32xf32> to vector<8x32xbf16>
    %c0_1 = arith.constant 0 : index
    %c0_2 = arith.constant 0 : index
    %2 = vector.load %arg2[%c0_1, %c0_2] : memref<32x128xbf16, #tpu.memory_space<vmem>>, vector<32x128xbf16>
    %cst = arith.constant dense<0.000000e+00> : vector<8x128xf32>
    %3 = tpu.matmul %1, %2, %cst {dimension_numbers = #tpu.dot_dimension_numbers<[1], [0], [0], [1], [0, 0, 1, 1], [], []>} : vector<8x32xbf16>, vector<32x128xbf16>, vector<8x128xf32> -> vector<8x128xf32>
    %c0_3 = arith.constant 0 : index
    %c0_4 = arith.constant 0 : index
    %4 = vector.load %arg3[%c0_3, %c0_4] : memref<1x128xf32, #tpu.memory_space<vmem>>, vector<1x128xf32>
    %5 = vector.broadcast %4 : vector<1x128xf32> to vector<8x128xf32>
    %6 = arith.addf %3, %5 : vector<8x128xf32>
    %cst_5 = arith.constant 0.000000e+00 : f32
    %7 = vector.broadcast %cst_5 : f32 to vector<8x128xf32>
    %8 = arith.maximumf %6, %7 : vector<8x128xf32>
    %9 = arith.truncf %8 : vector<8x128xf32> to vector<8x128xbf16>
    %c0_6 = arith.constant 0 : index
    %c0_7 = arith.constant 0 : index
    %10 = vector.load %arg4[%c0_6, %c0_7] : memref<128x128xbf16, #tpu.memory_space<vmem>>, vector<128x128xbf16>
    %cst_8 = arith.constant dense<0.000000e+00> : vector<8x128xf32>
    %11 = tpu.matmul %9, %10, %cst_8 {dimension_numbers = #tpu.dot_dimension_numbers<[1], [0], [0], [1], [0, 0, 1, 1], [], []>} : vector<8x128xbf16>, vector<128x128xbf16>, vector<8x128xf32> -> vector<8x128xf32>
    %c0_9 = arith.constant 0 : index
    %c0_10 = arith.constant 0 : index
    %12 = vector.load %arg5[%c0_9, %c0_10] : memref<1x128xf32, #tpu.memory_space<vmem>>, vector<1x128xf32>
    %13 = vector.broadcast %12 : vector<1x128xf32> to vector<8x128xf32>
    %14 = arith.addf %11, %13 : vector<8x128xf32>
    %cst_11 = arith.constant 0.000000e+00 : f32
    %15 = vector.broadcast %cst_11 : f32 to vector<8x128xf32>
    %16 = arith.maximumf %14, %15 : vector<8x128xf32>
    %17 = arith.truncf %16 : vector<8x128xf32> to vector<8x128xbf16>
    %c0_12 = arith.constant 0 : index
    %c0_13 = arith.constant 0 : index
    %18 = vector.load %arg6[%c0_12, %c0_13] : memref<128x128xbf16, #tpu.memory_space<vmem>>, vector<128x128xbf16>
    %cst_14 = arith.constant dense<0.000000e+00> : vector<8x128xf32>
    %19 = tpu.matmul %17, %18, %cst_14 {dimension_numbers = #tpu.dot_dimension_numbers<[1], [0], [0], [1], [0, 0, 1, 1], [], []>} : vector<8x128xbf16>, vector<128x128xbf16>, vector<8x128xf32> -> vector<8x128xf32>
    %c0_15 = arith.constant 0 : index
    %c0_16 = arith.constant 0 : index
    %20 = vector.load %arg7[%c0_15, %c0_16] : memref<1x128xf32, #tpu.memory_space<vmem>>, vector<1x128xf32>
    %21 = vector.broadcast %20 : vector<1x128xf32> to vector<8x128xf32>
    %22 = arith.addf %19, %21 : vector<8x128xf32>
    %23 = arith.truncf %22 : vector<8x128xf32> to vector<8x128xbf16>
    %c0_17 = arith.constant 0 : index
    %c0_18 = arith.constant 0 : index
    %24 = vector.load %arg8[%c0_17, %c0_18] : memref<8x128xbf16, #tpu.memory_space<vmem>>, vector<8x128xbf16>
    tpu.vector_store %arg8[%c0_17, %c0_18], %23 {strides = array<i32>} : memref<8x128xbf16, #tpu.memory_space<vmem>>, vector<8x128xbf16>,
    return
  }
  func.func @transform_0(%arg0: i32) -> (i32, i32) {
    %c0_i32 = arith.constant 0 : i32
    %c0_i32_0 = arith.constant 0 : i32
    return %arg0, %c0_i32 : i32, i32
  }
  func.func @transform_1(%arg0: i32) -> (i32, i32) {
    %c0_i32 = arith.constant 0 : i32
    %c0_i32_0 = arith.constant 0 : i32
    %c0_i32_1 = arith.constant 0 : i32
    return %c0_i32, %c0_i32_0 : i32, i32
  }
  func.func @transform_2(%arg0: i32) -> (i32, i32) {
    %c0_i32 = arith.constant 0 : i32
    %c0_i32_0 = arith.constant 0 : i32
    %c0_i32_1 = arith.constant 0 : i32
    return %c0_i32, %c0_i32_0 : i32, i32
  }
  func.func @transform_3(%arg0: i32) -> (i32, i32) {
    %c0_i32 = arith.constant 0 : i32
    %c0_i32_0 = arith.constant 0 : i32
    %c0_i32_1 = arith.constant 0 : i32
    return %c0_i32, %c0_i32_0 : i32, i32
  }
  func.func @transform_4(%arg0: i32) -> (i32, i32) {
    %c0_i32 = arith.constant 0 : i32
    %c0_i32_0 = arith.constant 0 : i32
    %c0_i32_1 = arith.constant 0 : i32
    return %c0_i32, %c0_i32_0 : i32, i32
  }
  func.func @transform_5(%arg0: i32) -> (i32, i32) {
    %c0_i32 = arith.constant 0 : i32
    %c0_i32_0 = arith.constant 0 : i32
    %c0_i32_1 = arith.constant 0 : i32
    return %c0_i32, %c0_i32_0 : i32, i32
  }
  func.func @transform_6(%arg0: i32) -> (i32, i32) {
    %c0_i32 = arith.constant 0 : i32
    %c0_i32_0 = arith.constant 0 : i32
    %c0_i32_1 = arith.constant 0 : i32
    return %c0_i32, %c0_i32_0 : i32, i32
  }
  func.func @transform_7(%arg0: i32) -> (i32, i32) {
    %c0_i32 = arith.constant 0 : i32
    %c0_i32_0 = arith.constant 0 : i32
    return %arg0, %c0_i32 : i32, i32
  }
}

</mosaic_0001>

<llo_original>
// kernel: qnet_forward.1
$region0: #{qnet_forward.1}
  #allocation0 [shape = 'u32[]', space=smem, size = 0x4, offset = 0x4, fixed_abs, tag = 'smem constant byte address 0x4 - core index']
  #allocation1 [shape = 'u32[144,128]{1,0:T(1,128)}', space=vmem, size = 0x12000, scoped, tag = 'internal scratch']
  %s0 = inlined_call_operand.hbm [shape: f32[8,32], index: 0, kind: input, shape index: {}]
  %s1 = inlined_call_operand.hbm [shape: bf16[32,128], index: 1, kind: input, shape index: {}]
  %s2 = inlined_call_operand.vmem [shape: f32[1,128], index: 2, kind: input, shape index: {}]
  %s3 = inlined_call_operand.hbm [shape: bf16[128,128], index: 3, kind: input, shape index: {}]
  %s4 = inlined_call_operand.vmem [shape: f32[1,128], index: 4, kind: input, shape index: {}]
  %s5 = inlined_call_operand.hbm [shape: bf16[128,128], index: 5, kind: input, shape index: {}]
  %s6 = inlined_call_operand.vmem [shape: f32[1,128], index: 6, kind: input, shape index: {}]
  %s7 = inlined_call_operand.vmem [shape: bf16[8,128], index: 7, kind: output, shape index: {}]
  %s8 = sld [smem:[#allocation0]]
  $region54: #{qnet_forward.1} parent=0
    _
  %s10 = ssub.s32 1, %s8
  %s11 = scalar_select 0, %s10, %s8
  $region1: #{qnet_forward.1} parent=0
    #allocation2 [shape = 'u8[4096]{0}', space=vmem, size = 0x1000, scoped, tag = 'input window, operand 0, single buffered']
    #allocation3 [shape = 's32[1]{0}', space=sflag, size = 0x4, scoped, tag = 'scoped memory for qnet_forward.1']
    #allocation4 [shape = 'u8[8192]{0}', space=vmem, size = 0x2000, scoped, tag = 'input window, operand 1, single buffered']
    #allocation5 [shape = 's32[1]{0}', space=sflag, size = 0x4, scoped, tag = 'scoped memory for qnet_forward.1']
    #allocation6 [shape = 'u8[32768]{0}', space=vmem, size = 0x8000, scoped, tag = 'input window, operand 3, single buffered']
    #allocation7 [shape = 'u8[32768]{0}', space=vmem, size = 0x8000, scoped, tag = 'input window, operand 5, single buffered']
    #allocation8 [shape = 's32[1]{0}', space=sflag, size = 0x4, scoped, tag = 'scoped memory for qnet_forward.1']
    %12 = vsyncpa [#allocation3], 0
    %13 = vsyncpa [#allocation5], 0
    %14 = vsyncpa [#allocation8], 0
    // Predicated region
    $region2: #{qnet_forward.1} parent=1 // pred_check
      _
    $region3: #{qnet_forward.1} parent=1 // pred_check_branch
      %16 = sbr.rel (0) target = $region5
    $region4: #{qnet_forward.1} parent=1 // pred_region
      %s18 = ssub.s32 128, 128
      %19 = vsyncadd [#allocation3], %s18
      %s21 = sshll.u32 [#allocation2], 4
      %s22 = int_to_ptr.vmem [resolvable:$true] %s21
      %24 = dma.hbm_to_vmem [thread:$0]  %s0, 128, %s22, [#allocation3]
    $region5: #{qnet_forward.1} parent=1 // pred_fallthru
      _
    // Predicated region
    $region6: #{qnet_forward.1} parent=1 // pred_check
      _
    $region7: #{qnet_forward.1} parent=1 // pred_check_branch
      %26 = sbr.rel (0) target = $region9
    $region8: #{qnet_forward.1} parent=1 // pred_region
      %s28 = ssub.s32 256, 256
      %29 = vsyncadd [#allocation5], %s28
      %s30 = sshll.u32 [#allocation4], 4
      %s31 = int_to_ptr.vmem [resolvable:$true] %s30
      %36 = dma.hbm_to_vmem [thread:$0]  %s1, 256, %s31, [#allocation5], 64, 64, 4
    $region9: #{qnet_forward.1} parent=1 // pred_fallthru
      _
    // Predicated region
    $region10: #{qnet_forward.1} parent=1 // pred_check
      _
    $region11: #{qnet_forward.1} parent=1 // pred_check_branch
      %38 = sbr.rel (0) target = $region13
    $region12: #{qnet_forward.1} parent=1 // pred_region
      _
    $region13: #{qnet_forward.1} parent=1 // pred_fallthru
      _
    // Predicated region
    $region14: #{qnet_forward.1} parent=1 // pred_check
      _
    $region15: #{qnet_forward.1} parent=1 // pred_check_branch
      %40 = sbr.rel (0) target = $region17
    $region16: #{qnet_forward.1} parent=1 // pred_region
      %s42 = ssub.s32 1024, 1024
      %43 = vsyncadd [#allocation5], %s42
      %s44 = sshll.u32 [#allocation6], 4
      %s45 = int_to_ptr.vmem [resolvable:$true] %s44
      %50 = dma.hbm_to_vmem [thread:$0]  %s3, 1024, %s45, [#allocation5], 64, 64, 4
    $region17: #{qnet_forward.1} parent=1 // pred_fallthru
      _
    // Predicated region
    $region18: #{qnet_forward.1} parent=1 // pred_check
      _
    $region19: #{qnet_forward.1} parent=1 // pred_check_branch
      %52 = sbr.rel (0) target = $region21
    $region20: #{qnet_forward.1} parent=1 // pred_region
      _
    $region21: #{qnet_forward.1} parent=1 // pred_fallthru
      _
    // Predicated region
    $region22: #{qnet_forward.1} parent=1 // pred_check
      _
    $region23: #{qnet_forward.1} parent=1 // pred_check_branch
      %54 = sbr.rel (0) target = $region25
    $region24: #{qnet_forward.1} parent=1 // pred_region
      %s56 = ssub.s32 1024, 1024
      %57 = vsyncadd [#allocation8], %s56
      %s58 = sshll.u32 [#allocation7], 4
      %s59 = int_to_ptr.vmem [resolvable:$true] %s58
      %64 = dma.hbm_to_vmem [thread:$0]  %s5, 1024, %s59, [#allocation8], 64, 64, 4
    $region25: #{qnet_forward.1} parent=1 // pred_fallthru
      _
    // Predicated region
    $region26: #{qnet_forward.1} parent=1 // pred_check
      _
    $region27: #{qnet_forward.1} parent=1 // pred_check_branch
      %66 = sbr.rel (0) target = $region29
    $region28: #{qnet_forward.1} parent=1 // pred_region
      _
    $region29: #{qnet_forward.1} parent=1 // pred_fallthru
      _
    // Predicated region
    $region30: #{qnet_forward.1} parent=1 // pred_check
      _
    $region31: #{qnet_forward.1} parent=1 // pred_check_branch
      %68 = sbr.rel (0) target = $region33
    $region32: #{qnet_forward.1} parent=1 // pred_region
      %69 = dma.done [#allocation3], 128
    $region33: #{qnet_forward.1} parent=1 // pred_fallthru
      _
    // Predicated region
    $region34: #{qnet_forward.1} parent=1 // pred_check
      _
    $region35: #{qnet_forward.1} parent=1 // pred_check_branch
      %71 = sbr.rel (0) target = $region37
    $region36: #{qnet_forward.1} parent=1 // pred_region
      %72 = dma.done [#allocation5], 256
    $region37: #{qnet_forward.1} parent=1 // pred_fallthru
      _
    // Predicated region
    $region38: #{qnet_forward.1} parent=1 // pred_check
      _
    $region39: #{qnet_forward.1} parent=1 // pred_check_branch
      %74 = sbr.rel (0) target = $region41
    $region40: #{qnet_forward.1} parent=1 // pred_region
      %75 = dma.done [#allocation5], 1024
    $region41: #{qnet_forward.1} parent=1 // pred_fallthru
      _
    // Predicated region
    $region42: #{qnet_forward.1} parent=1 // pred_check
      _
    $region43: #{qnet_forward.1} parent=1 // pred_check_branch
      %77 = sbr.rel (0) target = $region45
    $region44: #{qnet_forward.1} parent=1 // pred_region
      %78 = dma.done [#allocation8], 1024
    $region45: #{qnet_forward.1} parent=1 // pred_fallthru
      _
    %v80 = vld [vmem:[#allocation2] sm:$0xff]
    %v81 = vpack.c.bf16 %v80, %v80
    %v82 = vld [vmem:[#allocation4] sm:$0xf]
    %v83 = vld [vmem:[#allocation4 + $0x4] sm:$0xf]
    %v84 = vld [vmem:[#allocation4 + $0x8] sm:$0xf]
    %v85 = vld [vmem:[#allocation4 + $0xc] sm:$0xf]
    %v86 = vld [vmem:[%s2] sm:$0x1]
    %v88 = vlaneseq
    %v89 = vshrl.u32 %v88, 7
    %v90 = vsub.s32 0, %v89
    %v91 = vrot.slane %v86, %v90
    %v97 = vunpack.c.l.b16 %v82
    %v98 = vunpack.c.l.b16 %v83
    %v99 = vunpack.c.l.b16 %v84
    %v100 = vunpack.c.l.b16 %v85
    %v101 = vpack.c.b16 %v98, %v97
    %v102 = vpack.c.b16 %v100, %v99
    %vm105 = vcmask 261120
    %v107 = vsel %vm105, %v81, 0
    %109 = vmatprep.subr.bf16.mxu0 0
    %110 = vmatpush1.bf16.msra.mxu0 0
    %111 = vmatprep.subr.bf16.mxu0 0
    %112 = vmatpush1.bf16.msra.mxu0 0
    %113 = vmatprep.subr.bf16.mxu0 0
    %114 = vmatpush1.bf16.msra.mxu0 0
    %115 = vmatprep.subr.bf16.mxu0 0
    %116 = vmatpush1.bf16.msra.mxu0 0
    %117 = vmatprep.subr.bf16.mxu0 0
    %118 = vmatpush1.bf16.msra.mxu0 0
    %119 = vmatprep.subr.bf16.mxu0 0
    %120 = vmatpush1.bf16.msra.mxu0 0
    %121 = vmatprep.subr.bf16.mxu0 0
    %122 = vmatpush1.bf16.msra.mxu0 %v102
    %123 = vmatprep.subr.bf16.mxu0 0
    %124 = vmatpush1.bf16.msra.mxu0 %v101
    %125 = vmatprep.subr.bf16.mxu0 0
    %126 = vmatpush2.bf16.msra.mxu0 0
    %127 = vmatprep.subr.bf16.mxu0 0
    %128 = vmatpush2.bf16.msra.mxu0 0
    %129 = vmatprep.subr.bf16.mxu0 0
    %130 = vmatpush2.bf16.msra.mxu0 0
    %131 = vmatprep.subr.bf16.mxu0 0
    %132 = vmatpush2.bf16.msra.mxu0 0
    %133 = vmatprep.subr.bf16.mxu0 0
    %134 = vmatpush2.bf16.msra.mxu0 0
    %135 = vmatprep.subr.bf16.mxu0 0
    %136 = vmatpush2.bf16.msra.mxu0 0
    %137 = vmatprep.subr.bf16.mxu0 0
    %138 = vmatpush2.bf16.msra.mxu0 0
    %139 = vmatprep.subr.bf16.mxu0 0
    %140 = vmatpush2.bf16.msra.mxu0 0
    %141 = vmatprep.mubr.bf16.mxu0 0
    %142 = vmatmul.mubr.bf16.gmra.mxu0 %v107
    %v143 = vpop.f32.mrf.mxu0
    %v144 = vadd.f32 %v91, %v143
    %v145 = vpop.f32.mrf.mxu0
    %v146 = vpop.f32.mrf.mxu0
    %v147 = vpop.f32.mrf.mxu0
    %148 = vdwg.mxu0
    %v149 = vmax.f32 %v144, 0.0
    %v150 = vpack.c.bf16 %v149, %v149
    %v151 = vld [vmem:[#allocation6] sm:$0xf]
    %v152 = vld [vmem:[#allocation6 + $0x4] sm:$0xf]
    %v153 = vld [vmem:[#allocation6 + $0x8] sm:$0xf]
    %v154 = vld [vmem:[#allocation6 + $0xc] sm:$0xf]
    %v155 = vld [vmem:[#allocation6 + $0x10] sm:$0xf]
    %v156 = vld [vmem:[#allocation6 + $0x14] sm:$0xf]
    %v157 = vld [vmem:[#allocation6 + $0x18] sm:$0xf]
    %v158 = vld [vmem:[#allocation6 + $0x1c] sm:$0xf]
    %v159 = vld [vmem:[#allocation6 + $0x20] sm:$0xf]
    %v160 = vld [vmem:[#allocation6 + $0x24] sm:$0xf]
    %v161 = vld [vmem:[#allocation6 + $0x28] sm:$0xf]
    %v162 = vld [vmem:[#allocation6 + $0x2c] sm:$0xf]
    %v163 = vld [vmem:[#allocation6 + $0x30] sm:$0xf]
    %v164 = vld [vmem:[#allocation6 + $0x34] sm:$0xf]
    %v165 = vld [vmem:[#allocation6 + $0x38] sm:$0xf]
    %v166 = vld [vmem:[#allocation6 + $0x3c] sm:$0xf]
    %v167 = vld [vmem:[%s4] sm:$0x1]
    %v169 = vlaneseq
    %v170 = vshrl.u32 %v169, 7
    %v171 = vsub.s32 0, %v170
    %v172 = vrot.slane %v167, %v171
    %v190 = vunpack.c.l.b16 %v151
    %v191 = vunpack.c.l.b16 %v152
    %v192 = vunpack.c.l.b16 %v153
    %v193 = vunpack.c.l.b16 %v154
    %v194 = vunpack.c.l.b16 %v155
    %v195 = vunpack.c.l.b16 %v156
    %v196 = vunpack.c.l.b16 %v157
    %v197 = vunpack.c.l.b16 %v158
    %v198 = vunpack.c.l.b16 %v159
    %v199 = vunpack.c.l.b16 %v160
    %v200 = vunpack.c.l.b16 %v161
    %v201 = vunpack.c.l.b16 %v162
    %v202 = vunpack.c.l.b16 %v163
    %v203 = vunpack.c.l.b16 %v164
    %v204 = vunpack.c.l.b16 %v165
    %v205 = vunpack.c.l.b16 %v166
    %v206 = vpack.c.b16 %v191, %v190
    %v207 = vpack.c.b16 %v193, %v192
    %v208 = vpack.c.b16 %v195, %v194
    %v209 = vpack.c.b16 %v197, %v196
    %v210 = vpack.c.b16 %v199, %v198
    %v211 = vpack.c.b16 %v201, %v200
    %v212 = vpack.c.b16 %v203, %v202
    %v213 = vpack.c.b16 %v205, %v204
    %222 = vmatprep.subr.bf16.mxu0 0
    %223 = vmatpush1.bf16.msra.mxu0 %v213
    %224 = vmatprep.subr.bf16.mxu0 0
    %225 = vmatpush1.bf16.msra.mxu0 %v212
    %226 = vmatprep.subr.bf16.mxu0 0
    %227 = vmatpush1.bf16.msra.mxu0 %v211
    %228 = vmatprep.subr.bf16.mxu0 0
    %229 = vmatpush1.bf16.msra.mxu0 %v210
    %230 = vmatprep.subr.bf16.mxu0 0
    %231 = vmatpush1.bf16.msra.mxu0 %v209
    %232 = vmatprep.subr.bf16.mxu0 0
    %233 = vmatpush1.bf16.msra.mxu0 %v208
    %234 = vmatprep.subr.bf16.mxu0 0
    %235 = vmatpush1.bf16.msra.mxu0 %v207
    %236 = vmatprep.subr.bf16.mxu0 0
    %237 = vmatpush1.bf16.msra.mxu0 %v206
    %238 = vmatprep.subr.bf16.mxu0 0
    %239 = vmatpush2.bf16.msra.mxu0 0
    %240 = vmatprep.subr.bf16.mxu0 0
    %241 = vmatpush2.bf16.msra.mxu0 0
    %242 = vmatprep.subr.bf16.mxu0 0
    %243 = vmatpush2.bf16.msra.mxu0 0
    %244 = vmatprep.subr.bf16.mxu0 0
    %245 = vmatpush2.bf16.msra.mxu0 0
    %246 = vmatprep.subr.bf16.mxu0 0
    %247 = vmatpush2.bf16.msra.mxu0 0
    %248 = vmatprep.subr.bf16.mxu0 0
    %249 = vmatpush2.bf16.msra.mxu0 0
    %250 = vmatprep.subr.bf16.mxu0 0
    %251 = vmatpush2.bf16.msra.mxu0 0
    %252 = vmatprep.subr.bf16.mxu0 0
    %253 = vmatpush2.bf16.msra.mxu0 0
    %254 = vmatprep.mubr.bf16.mxu0 0
    %255 = vmatmul.mubr.bf16.gmra.mxu0 %v150
    %v256 = vpop.f32.mrf.mxu0
    %v257 = vadd.f32 %v172, %v256
    %v258 = vpop.f32.mrf.mxu0
    %v259 = vpop.f32.mrf.mxu0
    %v260 = vpop.f32.mrf.mxu0
    %261 = vdwg.mxu0
    %v262 = vmax.f32 %v257, 0.0
    %v263 = vpack.c.bf16 %v262, %v262
    %v264 = vld [vmem:[#allocation7] sm:$0xf]
    %v265 = vld [vmem:[#allocation7 + $0x4] sm:$0xf]
    %v266 = vld [vmem:[#allocation7 + $0x8] sm:$0xf]
    %v267 = vld [vmem:[#allocation7 + $0xc] sm:$0xf]
    %v268 = vld [vmem:[#allocation7 + $0x10] sm:$0xf]
    %v269 = vld [vmem:[#allocation7 + $0x14] sm:$0xf]
    %v270 = vld [vmem:[#allocation7 + $0x18] sm:$0xf]
    %v271 = vld [vmem:[#allocation7 + $0x1c] sm:$0xf]
    %v272 = vld [vmem:[#allocation7 + $0x20] sm:$0xf]
    %v273 = vld [vmem:[#allocation7 + $0x24] sm:$0xf]
    %v274 = vld [vmem:[#allocation7 + $0x28] sm:$0xf]
    %v275 = vld [vmem:[#allocation7 + $0x2c] sm:$0xf]
    %v276 = vld [vmem:[#allocation7 + $0x30] sm:$0xf]
    %v277 = vld [vmem:[#allocation7 + $0x34] sm:$0xf]
    %v278 = vld [vmem:[#allocation7 + $0x38] sm:$0xf]
    %v279 = vld [vmem:[#allocation7 + $0x3c] sm:$0xf]
    %v280 = vld [vmem:[%s6] sm:$0x1]
    %v282 = vlaneseq
    %v283 = vshrl.u32 %v282, 7
    %v284 = vsub.s32 0, %v283
    %v285 = vrot.slane %v280, %v284
    %v303 = vunpack.c.l.b16 %v264
    %v304 = vunpack.c.l.b16 %v265
    %v305 = vunpack.c.l.b16 %v266
    %v306 = vunpack.c.l.b16 %v267
    %v307 = vunpack.c.l.b16 %v268
    %v308 = vunpack.c.l.b16 %v269
    %v309 = vunpack.c.l.b16 %v270
    %v310 = vunpack.c.l.b16 %v271
    %v311 = vunpack.c.l.b16 %v272
    %v312 = vunpack.c.l.b16 %v273
    %v313 = vunpack.c.l.b16 %v274
    %v314 = vunpack.c.l.b16 %v275
    %v315 = vunpack.c.l.b16 %v276
    %v316 = vunpack.c.l.b16 %v277
    %v317 = vunpack.c.l.b16 %v278
    %v318 = vunpack.c.l.b16 %v279
    %v319 = vpack.c.b16 %v304, %v303
    %v320 = vpack.c.b16 %v306, %v305
    %v321 = vpack.c.b16 %v308, %v307
    %v322 = vpack.c.b16 %v310, %v309
    %v323 = vpack.c.b16 %v312, %v311
    %v324 = vpack.c.b16 %v314, %v313
    %v325 = vpack.c.b16 %v316, %v315
    %v326 = vpack.c.b16 %v318, %v317
    %335 = vmatprep.subr.bf16.mxu0 0
    %336 = vmatpush1.bf16.msra.mxu0 %v326
    %337 = vmatprep.subr.bf16.mxu0 0
    %338 = vmatpush1.bf16.msra.mxu0 %v325
    %339 = vmatprep.subr.bf16.mxu0 0
    %340 = vmatpush1.bf16.msra.mxu0 %v324
    %341 = vmatprep.subr.bf16.mxu0 0
    %342 = vmatpush1.bf16.msra.mxu0 %v323
    %343 = vmatprep.subr.bf16.mxu0 0
    %344 = vmatpush1.bf16.msra.mxu0 %v322
    %345 = vmatprep.subr.bf16.mxu0 0
    %346 = vmatpush1.bf16.msra.mxu0 %v321
    %347 = vmatprep.subr.bf16.mxu0 0
    %348 = vmatpush1.bf16.msra.mxu0 %v320
    %349 = vmatprep.subr.bf16.mxu0 0
    %350 = vmatpush1.bf16.msra.mxu0 %v319
    %351 = vmatprep.subr.bf16.mxu0 0
    %352 = vmatpush2.bf16.msra.mxu0 0
    %353 = vmatprep.subr.bf16.mxu0 0
    %354 = vmatpush2.bf16.msra.mxu0 0
    %355 = vmatprep.subr.bf16.mxu0 0
    %356 = vmatpush2.bf16.msra.mxu0 0
    %357 = vmatprep.subr.bf16.mxu0 0
    %358 = vmatpush2.bf16.msra.mxu0 0
    %359 = vmatprep.subr.bf16.mxu0 0
    %360 = vmatpush2.bf16.msra.mxu0 0
    %361 = vmatprep.subr.bf16.mxu0 0
    %362 = vmatpush2.bf16.msra.mxu0 0
    %363 = vmatprep.subr.bf16.mxu0 0
    %364 = vmatpush2.bf16.msra.mxu0 0
    %365 = vmatprep.subr.bf16.mxu0 0
    %366 = vmatpush2.bf16.msra.mxu0 0
    %367 = vmatprep.mubr.bf16.mxu0 0
    %368 = vmatmul.mubr.bf16.gmra.mxu0 %v263
    %v369 = vpop.f32.mrf.mxu0
    %v370 = vadd.f32 %v285, %v369
    %v371 = vpop.f32.mrf.mxu0
    %v372 = vpop.f32.mrf.mxu0
    %v373 = vpop.f32.mrf.mxu0
    %374 = vdwg.mxu0
    %v375 = vpack.c.bf16 %v370, %v370
    %376 = vst [vmem:[%s7] sm:$0xf] %v375
    // Predicated region
    $region46: #{qnet_forward.1} parent=1 // pred_check
      _
    $region47: #{qnet_forward.1} parent=1 // pred_check_branch
      %378 = sbr.rel (0) target = $region49
    $region48: #{qnet_forward.1} parent=1 // pred_region
      _
    $region49: #{qnet_forward.1} parent=1 // pred_fallthru
      _
    // Predicated region
    $region50: #{qnet_forward.1} parent=1 // pred_check
      _
    $region51: #{qnet_forward.1} parent=1 // pred_check_branch
      %380 = sbr.rel (0) target = $region53
    $region52: #{qnet_forward.1} parent=1 // pred_region
      _
    $region53: #{qnet_forward.1} parent=1 // pred_fallthru
      _
    %381 = vsyncpa [#allocation3], 1
    %382 = vsyncpa [#allocation5], 1
    %383 = vsyncpa [#allocation8], 1

</llo_original>
